<compile_context>
chip_gen: v6e
topology: v6e:2x2x1
jax: 0.10.0
libtpu: 0.0.40
codegen_flags: <defaults>
</compile_context>

<pallas_src>
import functools

import jax
import jax.numpy as jnp
from jax.experimental import pallas as pl
from jax.experimental.pallas import tpu as pltpu

# Edge-feature raw dims (the `all_dims` dict of the original script).
ALL_DIMS = {"efeat_relation": 4, "efeat_score": 1, "efeat_timestamp": 1}
EDGE_RAW_DIM = sum(ALL_DIMS.values())  # 6


def _pick_tile(n, max_tile=256):
    """Largest power-of-two row tile (multiple of 8) that divides n."""
    for t in (512, 256, 128, 64, 32, 16, 8):
        if t <= max_tile and t <= n and n % t == 0:
            return t
    return n  # fall back to a single full-extent block


# ----------------------------------------------------------------------------
# Pallas kernels
# ----------------------------------------------------------------------------
def _linear_kernel(x_ref, w_ref, o_ref):
    # y = x @ w  (bias-free; bf16 operands, f32 accumulate on the MXU)
    o_ref[...] = jnp.dot(x_ref[...], w_ref[...],
                         preferred_element_type=jnp.float32)


def linear(x, w, *, max_tile=256):
    """Row-tiled matmul: (M, K) @ (K, N) -> (M, N) f32. Operands cast to bf16."""
    m, kdim = x.shape
    n = w.shape[1]
    tm = _pick_tile(m, max_tile)
    return pl.pallas_call(
        _linear_kernel,
        out_shape=jax.ShapeDtypeStruct((m, n), jnp.float32),
        grid=(m // tm,),
        in_specs=[pl.BlockSpec((tm, kdim), lambda i: (i, 0)),
                  pl.BlockSpec((kdim, n), lambda i: (0, 0))],
        out_specs=pl.BlockSpec((tm, n), lambda i: (i, 0)),
        compiler_params=pltpu.CompilerParams(
            dimension_semantics=("parallel",)),
    )(x.astype(jnp.bfloat16), w.astype(jnp.bfloat16))


def _gat_aggregate_kernel(zsrc_ref, ses_ref, sdst_ref, o_ref, *,
                          num_heads, out_dim, apply_elu):
    # zsrc: (T, K, H*D) bf16   — gathered source-node features (message payload)
    # ses : (T, K, H)   f32    — precomputed (src + edge) attention logit terms
    # sdst: (T, H)      f32    — per-destination attention logit term
    # o   : (T, H*D)    f32
    s = ses_ref[...] + sdst_ref[...][:, None, :]          # (T, K, H)

    # F.leaky_relu (default negative_slope = 0.01)
    e = jnp.where(s > 0.0, s, 0.01 * s)

    # softmax over the mailbox (incoming-edge) axis, per node & head
    m = jnp.max(e, axis=1, keepdims=True)
    p = jnp.exp(e - m)
    inv = pl.reciprocal(jnp.sum(p, axis=1, keepdims=True), approx=True)
    alpha = p * inv                                       # (T, K, H)

    zs = zsrc_ref[...].astype(jnp.float32)                # (T, K, H*D)
    outs = []
    for h in range(num_heads):                            # H is small & static
        a_h = alpha[:, :, h][:, :, None]                  # (T, K, 1)
        z_h = zs[:, :, h * out_dim:(h + 1) * out_dim]     # (T, K, D)
        outs.append(jnp.sum(a_h * z_h, axis=1))           # (T, D)
    out = outs[0] if num_heads == 1 else jnp.concatenate(outs, axis=-1)

    if apply_elu:
        # fused inter-layer ELU; min() keeps the discarded branch finite
        out = jnp.where(out > 0.0, out, jnp.exp(jnp.minimum(out, 0.0)) - 1.0)

    o_ref[...] = out


def gat_aggregate(z_src, s_es, s_dst, *, num_heads, out_dim, apply_elu,
                  max_tile=256):
    n, k, hd = z_src.shape
    tn = _pick_tile(n, max_tile)
    return pl.pallas_call(
        functools.partial(_gat_aggregate_kernel, num_heads=num_heads,
                          out_dim=out_dim, apply_elu=apply_elu),
        out_shape=jax.ShapeDtypeStruct((n, hd), jnp.float32),
        grid=(n // tn,),
        in_specs=[pl.BlockSpec((tn, k, hd), lambda i: (i, 0, 0)),
                  pl.BlockSpec((tn, k, num_heads), lambda i: (i, 0, 0)),
                  pl.BlockSpec((tn, num_heads), lambda i: (i, 0))],
        out_specs=pl.BlockSpec((tn, hd), lambda i: (i, 0)),
        compiler_params=pltpu.CompilerParams(
            dimension_semantics=("parallel",)),
    )(z_src, s_es, s_dst)


# ----------------------------------------------------------------------------
# Parameter fusion (pure algebra, done once at init)
# ----------------------------------------------------------------------------
def fuse_head_params(head_params, out_dim):
    """Fold attn_fc and the edge projections into one matmul + a (6, H) matrix."""
    d = out_dim
    w_nfeat_all = jnp.concatenate([p["w_nfeat"] for p in head_params], axis=1)
    b_src, b_dst, v_edge = [], [], []
    for p in head_params:
        wa = p["w_attn"].reshape(-1)                       # (5D,)
        b_src.append(p["w_nfeat"] @ wa[0:d])               # (in_dim,)
        b_dst.append(p["w_nfeat"] @ wa[d:2 * d])           # (in_dim,)
        v_edge.append(jnp.concatenate([
            p["w_rel"] @ wa[2 * d:3 * d],
            p["w_sco"] @ wa[3 * d:4 * d],
            p["w_ts"] @ wa[4 * d:5 * d],
        ]))                                                # (6,)
    w_big = jnp.concatenate(
        [w_nfeat_all, jnp.stack(b_src, axis=1), jnp.stack(b_dst, axis=1)],
        axis=1)                                            # (in_dim, H*D + 2H)
    return {"w_big": w_big, "v_edge": jnp.stack(v_edge, axis=1)}  # (6, H)


# ----------------------------------------------------------------------------
# Model wrappers (glue in plain JAX)
# ----------------------------------------------------------------------------
def gat_layer_fused(h, graph, fused, *, num_heads, out_dim, apply_elu):
    """One MultiHeadGATLayer (merge='cat'), all heads in one pass."""
    src_ids, raw_edge, n_nodes, k_deg = graph
    hd = num_heads * out_dim

    # One MXU matmul produces z (N, H*D), s_src (N, H), s_dst (N, H).
    feats = linear(h, fused["w_big"])
    z = feats[:, :hd]
    s_src = feats[:, hd:hd + num_heads]
    s_dst = feats[:, hd + num_heads:]

    # Edge-feature contribution to the attention logit, folded to a (E, H) op.
    s_edge = jnp.dot(raw_edge, fused["v_edge"])            # (E, H), tiny

    # Per-destination mailboxes (edge e = dst*K + k, K-regular in-degree).
    s_es = (s_src[src_ids] + s_edge).reshape(n_nodes, k_deg, num_heads)
    z_src = z.astype(jnp.bfloat16)[src_ids].reshape(n_nodes, k_deg, hd)

    return gat_aggregate(z_src, s_es, s_dst, num_heads=num_heads,
                         out_dim=out_dim, apply_elu=apply_elu)


def gat_forward(graph, h, params):
    # layer1 (multi-head, cat) with fused ELU epilogue, then layer2 (1 head).
    h = gat_layer_fused(h, graph, params["layer1_fused"],
                        num_heads=params["num_heads"],
                        out_dim=params["hidden_dim"], apply_elu=True)
    h = gat_layer_fused(h, graph, params["layer2_fused"],
                        num_heads=1, out_dim=params["out_dim"],
                        apply_elu=False)
    return h
# TODO(synk): MultiHeadGATLayer's merge != 'cat' scalar-mean branch is unused by GAT.forward and not implemented.


# ----------------------------------------------------------------------------
# Deterministic parameter init (matches the original per-head Linear layout)
# ----------------------------------------------------------------------------
def _init_head(key, in_dim, out_dim):
    ks = jax.random.split(key, 5)

    def w(k, fan_in, fan_out):
        return (jax.random.normal(k, (fan_in, fan_out), jnp.float32)
                / jnp.sqrt(jnp.float32(fan_in)))

    return {
        "w_nfeat": w(ks[0], in_dim, out_dim),
        "w_rel": w(ks[1], ALL_DIMS["efeat_relation"], out_dim),
        "w_sco": w(ks[2], ALL_DIMS["efeat_score"], out_dim),
        "w_ts": w(ks[3], ALL_DIMS["efeat_timestamp"], out_dim),
        # attn_fc: Linear(5*out_dim, 1, bias=False) stored as a (5D,) vector
        "w_attn": (jax.random.normal(ks[4], (5 * out_dim,), jnp.float32)
                   / jnp.sqrt(jnp.float32(5 * out_dim))),
    }


def init_gat_params(key, in_dim, hidden_dim, out_dim, num_heads):
    k1, k2 = jax.random.split(key)
    layer1 = [_init_head(k, in_dim, hidden_dim)
              for k in jax.random.split(k1, num_heads)]
    layer2 = [_init_head(k2, hidden_dim * num_heads, out_dim)]
    return {
        "layer1_fused": fuse_head_params(layer1, hidden_dim),
        "layer2_fused": fuse_head_params(layer2, out_dim),
        "hidden_dim": hidden_dim,
        "out_dim": out_dim,
        "num_heads": num_heads,
    }


# ----------------------------------------------------------------------------
if __name__ == "__main__":
    # Small synthetic graph: 16 nodes, every node has exactly K=8 incoming edges
    # (DGL degree-bucketing then reduces to a single dense (N, K, ...) mailbox).
    N_NODES, K_DEG = 16, 8
    IN_DIM, HIDDEN_DIM, OUT_DIM, NUM_HEADS = 8, 8, 4, 2
    N_EDGES = N_NODES * K_DEG

    key = jax.random.PRNGKey(0)
    k_h, k_r, k_s, k_t, k_p = jax.random.split(key, 5)

    # node features
    h = jax.random.normal(k_h, (N_NODES, IN_DIM), jnp.float32)

    # deterministic edge list: edge e = dst*K + k has source (dst*3 + k*5 + 1) % N
    dst = jnp.repeat(jnp.arange(N_NODES), K_DEG)
    k_idx = jnp.tile(jnp.arange(K_DEG), N_NODES)
    src_ids = (dst * 3 + k_idx * 5 + 1) % N_NODES

    # raw edge features (g.edata['relation' | 'score' | 'timestamp'])
    rel = jax.random.normal(k_r, (N_EDGES, ALL_DIMS["efeat_relation"]), jnp.float32)
    score = jax.random.normal(k_s, (N_EDGES, ALL_DIMS["efeat_score"]), jnp.float32)
    ts = jax.random.normal(k_t, (N_EDGES, ALL_DIMS["efeat_timestamp"]), jnp.float32)
    raw_edge = jnp.concatenate([rel, score, ts], axis=-1)   # (E, 6)

    graph = (src_ids, raw_edge, N_NODES, K_DEG)
    params = init_gat_params(k_p, IN_DIM, HIDDEN_DIM, OUT_DIM, NUM_HEADS)

    out = gat_forward(graph, h, params)
    out = jax.block_until_ready(out)
    assert out.shape == (N_NODES, OUT_DIM), out.shape
    assert bool(jnp.all(jnp.isfinite(out)))
    print("KERNEL_OK")
</pallas_src>

<mosaic_0001>
module attributes {stable_mosaic.version = 11 : i64} {
  func.func @_linear_kernel(%arg0: i32, %arg1: memref<16x8xbf16, #tpu.memory_space<vmem>>, %arg2: memref<8x20xbf16, #tpu.memory_space<vmem>>, %arg3: memref<16x20xf32, #tpu.memory_space<vmem>>) attributes {dimension_semantics = [#tpu.dimension_semantics<parallel>], iteration_bounds = array<i64: 1>, scalar_prefetch = 0 : i64, scratch_operands = 0 : i64, tpu.core_type = #tpu.core_type<tc>, window_params = [{transform_indices = @transform_0, window_bounds = array<i64: 16, 8>}, {pipeline_mode = #tpu.pipeline_mode<synchronous>, transform_indices = @transform_1, window_bounds = array<i64: 8, 20>}, {transform_indices = @transform_2, window_bounds = array<i64: 16, 20>}]} {
    %c0 = arith.constant 0 : index
    %c0_0 = arith.constant 0 : index
    %0 = vector.load %arg1[%c0, %c0_0] : memref<16x8xbf16, #tpu.memory_space<vmem>>, vector<16x8xbf16>
    %c0_1 = arith.constant 0 : index
    %c0_2 = arith.constant 0 : index
    %1 = vector.load %arg2[%c0_1, %c0_2] : memref<8x20xbf16, #tpu.memory_space<vmem>>, vector<8x20xbf16>
    %cst = arith.constant dense<0.000000e+00> : vector<16x20xf32>
    %2 = tpu.matmul %0, %1, %cst {dimension_numbers = #tpu.dot_dimension_numbers<[1], [0], [0], [1], [0, 0, 1, 1], [], []>} : vector<16x8xbf16>, vector<8x20xbf16>, vector<16x20xf32> -> vector<16x20xf32>
    %c0_3 = arith.constant 0 : index
    %c0_4 = arith.constant 0 : index
    %3 = vector.load %arg3[%c0_3, %c0_4] : memref<16x20xf32, #tpu.memory_space<vmem>>, vector<16x20xf32>
    tpu.vector_store %arg3[%c0_3, %c0_4], %2 {strides = array<i32>} : memref<16x20xf32, #tpu.memory_space<vmem>>, vector<16x20xf32>,
    return
  }
  func.func @transform_0(%arg0: i32) -> (i32, i32) {
    %c0_i32 = arith.constant 0 : i32
    %c0_i32_0 = arith.constant 0 : i32
    return %arg0, %c0_i32 : i32, i32
  }
  func.func @transform_1(%arg0: i32) -> (i32, i32) {
    %c0_i32 = arith.constant 0 : i32
    %c0_i32_0 = arith.constant 0 : i32
    %c0_i32_1 = arith.constant 0 : i32
    return %c0_i32, %c0_i32_0 : i32, i32
  }
  func.func @transform_2(%arg0: i32) -> (i32, i32) {
    %c0_i32 = arith.constant 0 : i32
    %c0_i32_0 = arith.constant 0 : i32
    return %arg0, %c0_i32 : i32, i32
  }
}

</mosaic_0001>

<llo_original>
// kernel: tpu_custom_call.1
$region0: #{tpu_custom_call.1}
  #allocation0 [shape = 'u32[]', space=smem, size = 0x4, offset = 0x4, fixed_abs, tag = 'smem constant byte address 0x4 - core index']
  #allocation1 [shape = 'u32[144,128]{1,0:T(1,128)}', space=vmem, size = 0x12000, scoped, tag = 'internal scratch']
  %s0 = inlined_call_operand.vmem [shape: bf16[16,8], index: 0, kind: input, shape index: {}]
  %s1 = inlined_call_operand.vmem [shape: bf16[8,20], index: 1, kind: input, shape index: {}]
  %s2 = inlined_call_operand.hbm [shape: f32[16,20], index: 2, kind: output, shape index: {}]
  %s3 = sld [smem:[#allocation0]]
  $region18: #{tpu_custom_call.1} parent=0
    _
  %s5 = ssub.s32 1, %s3
  %s6 = scalar_select 0, %s5, %s3
  $region1: #{tpu_custom_call.1} parent=0
    #allocation2 [shape = 'u8[8192]{0}', space=vmem, size = 0x2000, scoped, tag = 'output window, operand 0, single buffered']
    #allocation3 [shape = 's32[1]{0}', space=sflag, size = 0x4, scoped, tag = 'scoped memory for tpu_custom_call.1']
    %7 = vsyncpa [#allocation3], 0
    // Predicated region
    $region2: #{tpu_custom_call.1} parent=1 // pred_check
      _
    $region3: #{tpu_custom_call.1} parent=1 // pred_check_branch
      %9 = sbr.rel (0) target = $region5
    $region4: #{tpu_custom_call.1} parent=1 // pred_region
      _
    $region5: #{tpu_custom_call.1} parent=1 // pred_fallthru
      _
    // Predicated region
    $region6: #{tpu_custom_call.1} parent=1 // pred_check
      _
    $region7: #{tpu_custom_call.1} parent=1 // pred_check_branch
      %11 = sbr.rel (0) target = $region9
    $region8: #{tpu_custom_call.1} parent=1 // pred_region
      _
    $region9: #{tpu_custom_call.1} parent=1 // pred_fallthru
      _
    %v13 = vld [vmem:[%s0] sm:$0xf]
    %v14 = vld [vmem:[%s0 + $0x4] sm:$0xf]
    %v15 = vld [vmem:[%s1] sm:$0xf]
    %v18 = vunpack.c.l.b16 %v13
    %v19 = vunpack.c.l.b16 %v14
    %v20 = vpack.c.b16 %v19, %v18
    %vm21 = vcmask 64512
    %v23 = vsel %vm21, %v20, 0
    %vm25 = vcmask 1043456
    %v27 = vsel %vm25, %v15, 0
    %29 = vmatprep.subr.bf16.mxu0 0
    %30 = vmatpush1.bf16.msra.mxu0 0
    %31 = vmatprep.subr.bf16.mxu0 0
    %32 = vmatpush1.bf16.msra.mxu0 0
    %33 = vmatprep.subr.bf16.mxu0 0
    %34 = vmatpush1.bf16.msra.mxu0 0
    %35 = vmatprep.subr.bf16.mxu0 0
    %36 = vmatpush1.bf16.msra.mxu0 0
    %37 = vmatprep.subr.bf16.mxu0 0
    %38 = vmatpush1.bf16.msra.mxu0 0
    %39 = vmatprep.subr.bf16.mxu0 0
    %40 = vmatpush1.bf16.msra.mxu0 0
    %41 = vmatprep.subr.bf16.mxu0 0
    %42 = vmatpush1.bf16.msra.mxu0 0
    %43 = vmatprep.subr.bf16.mxu0 0
    %44 = vmatpush1.bf16.msra.mxu0 %v27
    %45 = vmatprep.subr.bf16.mxu0 0
    %46 = vmatpush2.bf16.msra.mxu0 0
    %47 = vmatprep.subr.bf16.mxu0 0
    %48 = vmatpush2.bf16.msra.mxu0 0
    %49 = vmatprep.subr.bf16.mxu0 0
    %50 = vmatpush2.bf16.msra.mxu0 0
    %51 = vmatprep.subr.bf16.mxu0 0
    %52 = vmatpush2.bf16.msra.mxu0 0
    %53 = vmatprep.subr.bf16.mxu0 0
    %54 = vmatpush2.bf16.msra.mxu0 0
    %55 = vmatprep.subr.bf16.mxu0 0
    %56 = vmatpush2.bf16.msra.mxu0 0
    %57 = vmatprep.subr.bf16.mxu0 0
    %58 = vmatpush2.bf16.msra.mxu0 0
    %59 = vmatprep.subr.bf16.mxu0 0
    %60 = vmatpush2.bf16.msra.mxu0 0
    %61 = vmatprep.mubr.bf16.mxu0 0
    %62 = vmatmul.mubr.bf16.gmra.mxu0 %v23
    %v63 = vpop.f32.mrf.mxu0
    %v64 = vadd.f32 0.0, %v63
    %v65 = vpop.f32.mrf.mxu0
    %v66 = vpop.f32.mrf.mxu0
    %v67 = vadd.f32 0.0, %v66
    %v68 = vpop.f32.mrf.mxu0
    %69 = vdwg.mxu0
    %vm70 = vcmask 162816
    %71 = vst.msk [vmem:[#allocation2] sm:$0xff] %vm70, %v64
    %72 = vst.msk [vmem:[#allocation2 + $0x8] sm:$0xff] %vm70, %v67
    // Predicated region
    $region10: #{tpu_custom_call.1} parent=1 // pred_check
      _
    $region11: #{tpu_custom_call.1} parent=1 // pred_check_branch
      %74 = sbr.rel (0) target = $region13
    $region12: #{tpu_custom_call.1} parent=1 // pred_region
      %s76 = ssub.s32 256, 256
      %77 = vsyncadd [#allocation3], %s76
      %s78 = sshll.u32 [#allocation2], 4
      %s79 = int_to_ptr.vmem [resolvable:$true] %s78
      %84 = dma.vmem_to_hbm [thread:$0]  %s79, 256, %s2, [#allocation3], 128, 128, 8
    $region13: #{tpu_custom_call.1} parent=1 // pred_fallthru
      _
    // Predicated region
    $region14: #{tpu_custom_call.1} parent=1 // pred_check
      _
    $region15: #{tpu_custom_call.1} parent=1 // pred_check_branch
      %86 = sbr.rel (0) target = $region17
    $region16: #{tpu_custom_call.1} parent=1 // pred_region
      %87 = dma.done [#allocation3], 256
    $region17: #{tpu_custom_call.1} parent=1 // pred_fallthru
      _
    %88 = vsyncpa [#allocation3], 1

</llo_original>
